<compile_context>
chip_gen: v7x
topology: tpu7x:2x2x1
jax: 0.10.0
libtpu: 0.0.40
codegen_flags: <defaults>
</compile_context>

<pallas_src>
import functools

import jax
import jax.numpy as jnp
from jax import lax
from jax.experimental import pallas as pl
from jax.experimental.pallas import tpu as pltpu

_INV_SQRT2 = 0.7071067811865476  # 1/sqrt(2), literal constant (no traced sqrt)


def _cdiv(a, b):
    return (a + b - 1) // b


def _round_up(n, m):
    return ((n + m - 1) // m) * m


def _default_pack_width():
    """Target lane width: 128 on v5e and older (128-wide MXU), 256 on v6e/v7x."""
    try:
        kind = jax.devices()[0].device_kind.lower()
    except Exception:
        return 128
    for tag in ("v2", "v3", "v4", "v5"):
        if tag in kind:
            return 128
    return 256


def res_layer_kernel(x_ref, w_ref, b_ref, o_ref):
    # x_ref: [tB, Fp]   packed activation tile (p original rows per packed row)
    # w_ref: [Fp, Fp]   block-diagonal weight (p copies of W.T), VMEM-resident
    # b_ref: [1,  Fp]   tiled bias (2-D -> free sublane broadcast)
    # o_ref: [tB, Fp]
    x = x_ref[...]
    h = jnp.dot(x, w_ref[...], preferred_element_type=jnp.float32) + b_ref[...]
    # Exact (erf-based) GELU, matching nn.GELU() defaults.
    h = 0.5 * h * (1.0 + lax.erf(h * _INV_SQRT2))
    # Dropout(p): identity at inference time (module.eval()).
    o_ref[...] = (h + x).astype(o_ref.dtype)  # residual: fn(x) + x


@functools.partial(jax.jit, static_argnames=("block_b", "pack_width"))
def res_layer(x, w, b, *, block_b=2048, pack_width=None):
    """ResLayer forward:  GELU(x @ W.T + b) + x.

    x: [B, F] f32 activations.
    w: [F, F] f32 Linear weight in PyTorch [out, in] layout.
    b: [F]    f32 Linear bias.
    block_b: batch tile in *packed* rows (p original rows per packed row).
    pack_width: target lane width (128 / 256); autodetected when None.
    """
    B, F = x.shape
    if pack_width is None:
        pack_width = _default_pack_width()

    # ---- lane packing setup (free reshapes + tiny one-time weight build) ----
    p = pack_width // F if (F < pack_width and pack_width % F == 0) else 1
    Fp = p * F

    w_t = jnp.transpose(w)  # [in, out] so the kernel computes x @ W.T
    if p > 1:
        w_pk = jnp.kron(jnp.eye(p, dtype=w.dtype), w_t)  # [Fp, Fp] block-diag
        b_pk = jnp.tile(b.reshape(1, F), (1, p))          # [1, Fp]
    else:
        w_pk = w_t
        b_pk = b.reshape(1, F)

    # ---- tile math: minimal, balanced padding in packed-row space ----
    rows = _cdiv(B, p)                       # packed rows needed
    nblk = _cdiv(rows, block_b)              # number of grid blocks
    tB = _round_up(_cdiv(rows, nblk), 8)     # balanced block height, x8 sublanes
    rows_p = nblk * tB                       # padded packed rows
    B_pad = rows_p * p                       # padded original rows

    xp = x if B_pad == B else jnp.pad(x, ((0, B_pad - B), (0, 0)))
    xp = xp.reshape(rows_p, Fp)              # free row-major reshape

    out = pl.pallas_call(
        res_layer_kernel,
        out_shape=jax.ShapeDtypeStruct((rows_p, Fp), x.dtype),
        grid_spec=pltpu.PrefetchScalarGridSpec(
            num_scalar_prefetch=0,
            grid=(nblk,),
            in_specs=[
                pl.BlockSpec((tB, Fp), lambda i: (i, 0)),   # activation tile
                pl.BlockSpec((Fp, Fp), lambda i: (0, 0)),   # weight, resident
                pl.BlockSpec((1, Fp), lambda i: (0, 0)),    # bias, resident
            ],
            out_specs=pl.BlockSpec((tB, Fp), lambda i: (i, 0)),
        ),
        compiler_params=pltpu.CompilerParams(
            # Batch-parallel axis: balanced blocks shard across the two
            # TensorCores on v7x; no-op on single-TC v5e/v6e.
            dimension_semantics=("parallel",),
        ),
    )(xp, w_pk, b_pk)

    out = out.reshape(B_pad, F)
    return out if B_pad == B else out[:B]


def reference_forward(x, w, b):
    h = x @ w.T + b
    h = 0.5 * h * (1.0 + lax.erf(h * _INV_SQRT2))
    return h + x


if __name__ == "__main__":
    # Small shapes consistent with the module: batch B=2, feature_len F=32.
    B, F = 2, 32

    key = jax.random.PRNGKey(0)
    kx, kw, kb, kx2 = jax.random.split(key, 4)

    x = jax.random.normal(kx, (B, F), dtype=jnp.float32)
    scale = 1.0 / float(F) ** 0.5
    w = jax.random.uniform(kw, (F, F), jnp.float32, -scale, scale)  # [out, in]
    b = jax.random.uniform(kb, (F,), jnp.float32, -scale, scale)

    y = res_layer(x, w, b)
    jax.block_until_ready(y)
    y_ref = reference_forward(x, w, b)
    assert y.shape == (B, F)
    assert jnp.allclose(y, y_ref, atol=1e-5, rtol=1e-5)

    # Larger, non-aligned batch (single big block, minimal padding path).
    B2 = 300
    x2 = jax.random.normal(kx2, (B2, F), dtype=jnp.float32)
    y2 = res_layer(x2, w, b)
    jax.block_until_ready(y2)
    y2_ref = reference_forward(x2, w, b)
    assert y2.shape == (B2, F)
    assert jnp.allclose(y2, y2_ref, atol=1e-5, rtol=1e-5)

    # Multi-block grid with balanced tiles (explicit 128-lane packing so the
    # grid has 2 blocks regardless of which TPU generation runs the test).
    y3 = res_layer(x2, w, b, block_b=40, pack_width=128)
    jax.block_until_ready(y3)
    assert y3.shape == (B2, F)
    assert jnp.allclose(y3, y2_ref, atol=1e-5, rtol=1e-5)

    print("KERNEL_OK")
</pallas_src>

<mosaic_0001>
module attributes {stable_mosaic.version = 11 : i64} {
  func.func @res_layer_kernel(%arg0: i32, %arg1: memref<8x256xf32, #tpu.memory_space<vmem>>, %arg2: memref<256x256xf32, #tpu.memory_space<vmem>>, %arg3: memref<1x256xf32, #tpu.memory_space<vmem>>, %arg4: memref<8x256xf32, #tpu.memory_space<vmem>>) attributes {dimension_semantics = [#tpu.dimension_semantics<parallel>], iteration_bounds = array<i64: 1>, scalar_prefetch = 0 : i64, scratch_operands = 0 : i64, tpu.core_type = #tpu.core_type<tc>, window_params = [{transform_indices = @transform_0, window_bounds = array<i64: 8, 256>}, {pipeline_mode = #tpu.pipeline_mode<synchronous>, transform_indices = @transform_1, window_bounds = array<i64: 256, 256>}, {pipeline_mode = #tpu.pipeline_mode<synchronous>, transform_indices = @transform_2, window_bounds = array<i64: 1, 256>}, {transform_indices = @transform_3, window_bounds = array<i64: 8, 256>}]} {
    %c0 = arith.constant 0 : index
    %c0_0 = arith.constant 0 : index
    %0 = vector.load %arg1[%c0, %c0_0] : memref<8x256xf32, #tpu.memory_space<vmem>>, vector<8x256xf32>
    %c0_1 = arith.constant 0 : index
    %c0_2 = arith.constant 0 : index
    %1 = vector.load %arg2[%c0_1, %c0_2] : memref<256x256xf32, #tpu.memory_space<vmem>>, vector<256x256xf32>
    %cst = arith.constant dense<0.000000e+00> : vector<8x256xf32>
    %2 = tpu.matmul %0, %1, %cst {dimension_numbers = #tpu.dot_dimension_numbers<[1], [0], [0], [1], [0, 0, 1, 1], [], []>} : vector<8x256xf32>, vector<256x256xf32>, vector<8x256xf32> -> vector<8x256xf32>
    %c0_3 = arith.constant 0 : index
    %c0_4 = arith.constant 0 : index
    %3 = vector.load %arg3[%c0_3, %c0_4] : memref<1x256xf32, #tpu.memory_space<vmem>>, vector<1x256xf32>
    %4 = vector.broadcast %3 : vector<1x256xf32> to vector<8x256xf32>
    %5 = arith.addf %2, %4 : vector<8x256xf32>
    %cst_5 = arith.constant 5.000000e-01 : f32
    %6 = vector.broadcast %cst_5 : f32 to vector<8x256xf32>
    %7 = arith.mulf %6, %5 : vector<8x256xf32>
    %cst_6 = arith.constant 0.707106769 : f32
    %8 = vector.broadcast %cst_6 : f32 to vector<8x256xf32>
    %9 = arith.mulf %5, %8 : vector<8x256xf32>
    %10 = math.erf %9 : vector<8x256xf32>
    %cst_7 = arith.constant 1.000000e+00 : f32
    %11 = vector.broadcast %cst_7 : f32 to vector<8x256xf32>
    %12 = arith.addf %11, %10 : vector<8x256xf32>
    %13 = arith.mulf %7, %12 : vector<8x256xf32>
    %14 = arith.addf %13, %0 : vector<8x256xf32>
    %c0_8 = arith.constant 0 : index
    %c0_9 = arith.constant 0 : index
    %15 = vector.load %arg4[%c0_8, %c0_9] : memref<8x256xf32, #tpu.memory_space<vmem>>, vector<8x256xf32>
    tpu.vector_store %arg4[%c0_8, %c0_9], %14 {strides = array<i32>} : memref<8x256xf32, #tpu.memory_space<vmem>>, vector<8x256xf32>,
    return
  }
  func.func @transform_0(%arg0: i32) -> (i32, i32) {
    %c0_i32 = arith.constant 0 : i32
    %c0_i32_0 = arith.constant 0 : i32
    return %arg0, %c0_i32 : i32, i32
  }
  func.func @transform_1(%arg0: i32) -> (i32, i32) {
    %c0_i32 = arith.constant 0 : i32
    %c0_i32_0 = arith.constant 0 : i32
    %c0_i32_1 = arith.constant 0 : i32
    return %c0_i32, %c0_i32_0 : i32, i32
  }
  func.func @transform_2(%arg0: i32) -> (i32, i32) {
    %c0_i32 = arith.constant 0 : i32
    %c0_i32_0 = arith.constant 0 : i32
    %c0_i32_1 = arith.constant 0 : i32
    return %c0_i32, %c0_i32_0 : i32, i32
  }
  func.func @transform_3(%arg0: i32) -> (i32, i32) {
    %c0_i32 = arith.constant 0 : i32
    %c0_i32_0 = arith.constant 0 : i32
    return %arg0, %c0_i32 : i32, i32
  }
}

</mosaic_0001>

<llo_original>
// kernel: res_layer.1
$region0: #{res_layer.1}
  #allocation0 [shape = 'u32[]', space=smem, size = 0x4, offset = 0x4, fixed_abs, tag = 'smem constant byte address 0x4 - core index']
  #allocation1 [shape = 'u32[144,128]{1,0:T(1,128)}', space=vmem, size = 0x12000, scoped, tag = 'internal scratch']
  %s0 = inlined_call_operand.vmem [shape: f32[8,256], index: 0, kind: input, shape index: {}]
  %s1 = inlined_call_operand.vmem [shape: f32[256,256], index: 1, kind: input, shape index: {}]
  %s2 = inlined_call_operand.vmem [shape: f32[1,256], index: 2, kind: input, shape index: {}]
  %s3 = inlined_call_operand.vmem [shape: f32[8,256], index: 3, kind: output, shape index: {}]
  %s4 = sld [smem:[#allocation0]]
  $region22: #{res_layer.1} parent=0
    _
  %s6 = ssub.s32 1, %s4
  %s7 = scalar_select 0, %s6, %s4
  // Predicated region
  $region2: #{res_layer.1} parent=0 // pred_check
    _
  $region3: #{res_layer.1} parent=0 // pred_check_branch
    %9 = sbr.rel (0) target = $region5
  $region4: #{res_layer.1} parent=0 // pred_region
    _
  $region5: #{res_layer.1} parent=0 // pred_fallthru
    _
  // Predicated region
  $region6: #{res_layer.1} parent=0 // pred_check
    _
  $region7: #{res_layer.1} parent=0 // pred_check_branch
    %11 = sbr.rel (0) target = $region9
  $region8: #{res_layer.1} parent=0 // pred_region
    _
  $region9: #{res_layer.1} parent=0 // pred_fallthru
    _
  // Predicated region
  $region10: #{res_layer.1} parent=0 // pred_check
    _
  $region11: #{res_layer.1} parent=0 // pred_check_branch
    %13 = sbr.rel (0) target = $region13
  $region12: #{res_layer.1} parent=0 // pred_region
    _
  $region13: #{res_layer.1} parent=0 // pred_fallthru
    _
  %v14 = vld [vmem:[%s0] sm:$0xff]
  %v15 = vld [vmem:[%s0 + $0x8] sm:$0xff]
  %v16 = vld [vmem:[%s1] sm:$0xff]
  %v17 = vld [vmem:[%s1 + $0x8] sm:$0xff]
  %v18 = vld [vmem:[%s1 + $0x10] sm:$0xff]
  %v19 = vld [vmem:[%s1 + $0x18] sm:$0xff]
  %v20 = vld [vmem:[%s1 + $0x20] sm:$0xff]
  %v21 = vld [vmem:[%s1 + $0x28] sm:$0xff]
  %v22 = vld [vmem:[%s1 + $0x30] sm:$0xff]
  %v23 = vld [vmem:[%s1 + $0x38] sm:$0xff]
  %v24 = vld [vmem:[%s1 + $0x40] sm:$0xff]
  %v25 = vld [vmem:[%s1 + $0x48] sm:$0xff]
  %v26 = vld [vmem:[%s1 + $0x50] sm:$0xff]
  %v27 = vld [vmem:[%s1 + $0x58] sm:$0xff]
  %v28 = vld [vmem:[%s1 + $0x60] sm:$0xff]
  %v29 = vld [vmem:[%s1 + $0x68] sm:$0xff]
  %v30 = vld [vmem:[%s1 + $0x70] sm:$0xff]
  %v31 = vld [vmem:[%s1 + $0x78] sm:$0xff]
  %v32 = vld [vmem:[%s1 + $0x80] sm:$0xff]
  %v33 = vld [vmem:[%s1 + $0x88] sm:$0xff]
  %v34 = vld [vmem:[%s1 + $0x90] sm:$0xff]
  %v35 = vld [vmem:[%s1 + $0x98] sm:$0xff]
  %v36 = vld [vmem:[%s1 + $0xa0] sm:$0xff]
  %v37 = vld [vmem:[%s1 + $0xa8] sm:$0xff]
  %v38 = vld [vmem:[%s1 + $0xb0] sm:$0xff]
  %v39 = vld [vmem:[%s1 + $0xb8] sm:$0xff]
  %v40 = vld [vmem:[%s1 + $0xc0] sm:$0xff]
  %v41 = vld [vmem:[%s1 + $0xc8] sm:$0xff]
  %v42 = vld [vmem:[%s1 + $0xd0] sm:$0xff]
  %v43 = vld [vmem:[%s1 + $0xd8] sm:$0xff]
  %v44 = vld [vmem:[%s1 + $0xe0] sm:$0xff]
  %v45 = vld [vmem:[%s1 + $0xe8] sm:$0xff]
  %v46 = vld [vmem:[%s1 + $0xf0] sm:$0xff]
  %v47 = vld [vmem:[%s1 + $0xf8] sm:$0xff]
  %v48 = vld [vmem:[%s1 + $0x100] sm:$0xff]
  %v49 = vld [vmem:[%s1 + $0x108] sm:$0xff]
  %v50 = vld [vmem:[%s1 + $0x110] sm:$0xff]
  %v51 = vld [vmem:[%s1 + $0x118] sm:$0xff]
  %v52 = vld [vmem:[%s1 + $0x120] sm:$0xff]
  %v53 = vld [vmem:[%s1 + $0x128] sm:$0xff]
  %v54 = vld [vmem:[%s1 + $0x130] sm:$0xff]
  %v55 = vld [vmem:[%s1 + $0x138] sm:$0xff]
  %v56 = vld [vmem:[%s1 + $0x140] sm:$0xff]
  %v57 = vld [vmem:[%s1 + $0x148] sm:$0xff]
  %v58 = vld [vmem:[%s1 + $0x150] sm:$0xff]
  %v59 = vld [vmem:[%s1 + $0x158] sm:$0xff]
  %v60 = vld [vmem:[%s1 + $0x160] sm:$0xff]
  %v61 = vld [vmem:[%s1 + $0x168] sm:$0xff]
  %v62 = vld [vmem:[%s1 + $0x170] sm:$0xff]
  %v63 = vld [vmem:[%s1 + $0x178] sm:$0xff]
  %v64 = vld [vmem:[%s1 + $0x180] sm:$0xff]
  %v65 = vld [vmem:[%s1 + $0x188] sm:$0xff]
  %v66 = vld [vmem:[%s1 + $0x190] sm:$0xff]
  %v67 = vld [vmem:[%s1 + $0x198] sm:$0xff]
  %v68 = vld [vmem:[%s1 + $0x1a0] sm:$0xff]
  %v69 = vld [vmem:[%s1 + $0x1a8] sm:$0xff]
  %v70 = vld [vmem:[%s1 + $0x1b0] sm:$0xff]
  %v71 = vld [vmem:[%s1 + $0x1b8] sm:$0xff]
  %v72 = vld [vmem:[%s1 + $0x1c0] sm:$0xff]
  %v73 = vld [vmem:[%s1 + $0x1c8] sm:$0xff]
  %v74 = vld [vmem:[%s1 + $0x1d0] sm:$0xff]
  %v75 = vld [vmem:[%s1 + $0x1d8] sm:$0xff]
  %v76 = vld [vmem:[%s1 + $0x1e0] sm:$0xff]
  %v77 = vld [vmem:[%s1 + $0x1e8] sm:$0xff]
  %v78 = vld [vmem:[%s1 + $0x1f0] sm:$0xff]
  %v79 = vld [vmem:[%s1 + $0x1f8] sm:$0xff]
  %v80 = vld [vmem:[%s2] sm:$0x3]
  %v82 = vlaneseq
  %v83 = vshrl.u32 %v82, 7
  %v84 = vsub.s32 0, %v83
  %v85 = vrot.slane %v80, %v84
  %v86 = vlaneseq
  %v87 = vshrl.u32 %v86, 7
  %v88 = vsub.s32 1, %v87
  %v89 = vrot.slane %v80, %v88
  %92 = vmatprep.subr.mxu0 %v17
  %93 = vmatpush1.msra.mxu0 %v16
  %94 = vmatprep.subr.mxu0 %v19
  %95 = vmatpush1.msra.mxu0 %v18
  %96 = vmatprep.subr.mxu0 %v21
  %97 = vmatpush1.msra.mxu0 %v20
  %98 = vmatprep.subr.mxu0 %v23
  %99 = vmatpush1.msra.mxu0 %v22
  %100 = vmatprep.subr.mxu0 %v25
  %101 = vmatpush1.msra.mxu0 %v24
  %102 = vmatprep.subr.mxu0 %v27
  %103 = vmatpush1.msra.mxu0 %v26
  %104 = vmatprep.subr.mxu0 %v29
  %105 = vmatpush1.msra.mxu0 %v28
  %106 = vmatprep.subr.mxu0 %v31
  %107 = vmatpush1.msra.mxu0 %v30
  %108 = vmatprep.subr.mxu0 %v33
  %109 = vmatpush1.msra.mxu0 %v32
  %110 = vmatprep.subr.mxu0 %v35
  %111 = vmatpush1.msra.mxu0 %v34
  %112 = vmatprep.subr.mxu0 %v37
  %113 = vmatpush1.msra.mxu0 %v36
  %114 = vmatprep.subr.mxu0 %v39
  %115 = vmatpush1.msra.mxu0 %v38
  %116 = vmatprep.subr.mxu0 %v41
  %117 = vmatpush1.msra.mxu0 %v40
  %118 = vmatprep.subr.mxu0 %v43
  %119 = vmatpush1.msra.mxu0 %v42
  %120 = vmatprep.subr.mxu0 %v45
  %121 = vmatpush1.msra.mxu0 %v44
  %122 = vmatprep.subr.mxu0 %v47
  %123 = vmatpush1.msra.mxu0 %v46
  %124 = vmatprep.subr.mxu0 %v49
  %125 = vmatpush1.msra.mxu0 %v48
  %126 = vmatprep.subr.mxu0 %v51
  %127 = vmatpush1.msra.mxu0 %v50
  %128 = vmatprep.subr.mxu0 %v53
  %129 = vmatpush1.msra.mxu0 %v52
  %130 = vmatprep.subr.mxu0 %v55
  %131 = vmatpush1.msra.mxu0 %v54
  %132 = vmatprep.subr.mxu0 %v57
  %133 = vmatpush1.msra.mxu0 %v56
  %134 = vmatprep.subr.mxu0 %v59
  %135 = vmatpush1.msra.mxu0 %v58
  %136 = vmatprep.subr.mxu0 %v61
  %137 = vmatpush1.msra.mxu0 %v60
  %138 = vmatprep.subr.mxu0 %v63
  %139 = vmatpush1.msra.mxu0 %v62
  %140 = vmatprep.subr.mxu0 %v65
  %141 = vmatpush1.msra.mxu0 %v64
  %142 = vmatprep.subr.mxu0 %v67
  %143 = vmatpush1.msra.mxu0 %v66
  %144 = vmatprep.subr.mxu0 %v69
  %145 = vmatpush1.msra.mxu0 %v68
  %146 = vmatprep.subr.mxu0 %v71
  %147 = vmatpush1.msra.mxu0 %v70
  %148 = vmatprep.subr.mxu0 %v73
  %149 = vmatpush1.msra.mxu0 %v72
  %150 = vmatprep.subr.mxu0 %v75
  %151 = vmatpush1.msra.mxu0 %v74
  %152 = vmatprep.subr.mxu0 %v77
  %153 = vmatpush1.msra.mxu0 %v76
  %154 = vmatprep.subr.mxu0 %v79
  %155 = vmatpush1.msra.mxu0 %v78
  %156 = vmatprep.mubr.f32.mxu0 %v15
  %157 = vmatmul.mubr.f32.gmra.mrb[0].mxu0 %v14
  %v158 = vpop.f32.mrb[0].mxu0
  %v159 = vadd.f32 %v85, %v158
  %v160 = vpop.f32.mrb[0].mxu0
  %v161 = vadd.f32 %v89, %v160
  %162 = vdwg.mxu0
  %v163 = vmul.f32 %v159, 0.5
  %v164 = vmul.f32 %v161, 0.5
  %v165 = vmul.f32 %v159, 0.70710677
  %v166 = vmul.f32 %v161, 0.70710677
  %v167 = verf.f32.pop %v165
  %v168 = verf.f32.pop %v166
  %v169 = vadd.f32 %v167, 1.0
  %v170 = vadd.f32 %v168, 1.0
  %v171 = vmul.f32 %v163, %v169
  %v172 = vmul.f32 %v164, %v170
  %v173 = vadd.f32 %v171, %v14
  %v174 = vadd.f32 %v172, %v15
  %175 = vst [vmem:[%s3] sm:$0xff] %v173
  %176 = vst [vmem:[%s3 + $0x8] sm:$0xff] %v174
  // Predicated region
  $region14: #{res_layer.1} parent=0 // pred_check
    _
  $region15: #{res_layer.1} parent=0 // pred_check_branch
    %178 = sbr.rel (0) target = $region17
  $region16: #{res_layer.1} parent=0 // pred_region
    _
  $region17: #{res_layer.1} parent=0 // pred_fallthru
    _
  // Predicated region
  $region18: #{res_layer.1} parent=0 // pred_check
    _
  $region19: #{res_layer.1} parent=0 // pred_check_branch
    %180 = sbr.rel (0) target = $region21
  $region20: #{res_layer.1} parent=0 // pred_region
    _
  $region21: #{res_layer.1} parent=0 // pred_fallthru
    _

</llo_original>
